<compile_context>
chip_gen: v6e
topology: v6e:2x2x1
jax: 0.10.0
libtpu: 0.0.40
codegen_flags: <defaults>
</compile_context>

<pallas_src>
import jax
import jax.numpy as jnp
from jax.experimental import pallas as pl
from jax.experimental.pallas import tpu as pltpu


def _round_up(a: int, b: int) -> int:
    return (a + b - 1) // b * b


def _seq_label_kernel(x_ref, w1_ref, b1_ref, wh_ref, bh_ref, out_ref):
    # x_ref:  (tm, H)      native dtype (f32 or bf16)
    # w1_ref: (H, H/2)     bf16      b1_ref: (1, H/2)   f32
    # wh_ref: (H/2, Npad)  bf16      bh_ref: (1, Npad)  f32   (fused sub|obj, zero-padded)
    # out_ref:(tm, Npad)   f32
    #
    # Cast to bf16 in-kernel (avoids a separate un-fused wrapper HBM pass).
    x = x_ref[...].astype(jnp.bfloat16)

    # Linear(hidden -> hidden/2) + bias + ReLU.  bf16 MXU matmul, f32 accumulate.
    tmp = jnp.dot(x, w1_ref[...], preferred_element_type=jnp.float32) + b1_ref[...]
    tmp = jnp.maximum(tmp, 0.0)

    # Dropout is identity in inference mode.
    # TODO(synk): training-mode dropout would need pltpu.prng_seed/prng_random_bits.

    # Single fused head matmul (sub and obj heads share one lane-dense output slab).
    tmp = tmp.astype(wh_ref.dtype)
    out_ref[...] = (
        jnp.dot(tmp, wh_ref[...], preferred_element_type=jnp.float32) + bh_ref[...]
    ).astype(out_ref.dtype)


def _pick_tm(m: int, hidden: int, half: int, n_pad: int) -> int:
    """Row-tile size: as large as the VMEM budget allows, >=2 steps when m>256."""
    # Per-row tile bytes: f32 x tile + f32 out tile, each double-buffered.
    per_row = 2 * hidden * 4 + 2 * n_pad * 4
    # Resident weights/biases: budget two copies (Pallas double-buffers them
    # even though the constant index_map means they are only DMA'd once).
    weight_bytes = 2 * (hidden * half * 2 + half * n_pad * 2 + half * 4 + n_pad * 4)
    budget = 24 * 1024 * 1024  # leave headroom inside the 32 MiB vmem limit
    avail = max(budget - weight_bytes, per_row * 256)
    tm = min(2048, max(256, (avail // per_row) // 256 * 256))
    if m <= 256:
        # Single step; block equal to the full row extent is always legal.
        tm = min(tm, m)
    else:
        # Keep at least 2 grid steps so the "parallel" axis can be sharded
        # across both TensorCores on dual-TC chips (v7x).
        tm = min(tm, max(256, _round_up(pl.cdiv(m, 2), 256)))
    return tm


def make_sequence_label_for_so(w1, b1, w_sub, b_sub, w_obj, b_obj):
    """One-time parameter prep (fuse heads, pad, cast); returns jitted fwd(x).

    Weights are stored pre-transposed as (in, out).  Returns a function
    x:(bs, seq_len, hidden) -> (sub, obj), each (bs, seq_len, tag) float32.
    """
    hidden, half = w1.shape
    tag = w_sub.shape[1]
    n_fused = 2 * tag
    n_pad = _round_up(n_fused, 128)

    # Fuse the two heads into one lane-dense (128-multiple) output slab so the
    # kernel's stores are unmasked vst.  Done ONCE here, not per call.
    wh = jnp.concatenate([w_sub, w_obj], axis=1)                    # (half, 2*tag)
    wh_b = jnp.pad(wh, ((0, 0), (0, n_pad - n_fused))).astype(jnp.bfloat16)
    bh = jnp.concatenate([b_sub, b_obj], axis=0)                    # (2*tag,)
    bh_2d = jnp.pad(bh, (0, n_pad - n_fused)).reshape(1, n_pad).astype(jnp.float32)
    w1_b = w1.astype(jnp.bfloat16)
    b1_2d = b1.reshape(1, half).astype(jnp.float32)

    @jax.jit
    def fwd(x):
        bs, seq_len, h = x.shape
        assert h == hidden
        m = bs * seq_len
        x2d = x.reshape(m, hidden)                 # no pad, no dtype copy

        tm = _pick_tm(m, hidden, half, n_pad)
        grid = (pl.cdiv(m, tm),)                   # ragged last block is masked

        flops = 2 * m * hidden * half + 2 * m * half * n_fused
        bytes_accessed = (
            m * hidden * x2d.dtype.itemsize        # x
            + hidden * half * 2 + half * n_pad * 2  # bf16 weights
            + half * 4 + n_pad * 4                  # f32 biases
            + m * n_pad * 4                         # f32 output slab
        )

        out = pl.pallas_call(
            _seq_label_kernel,
            out_shape=jax.ShapeDtypeStruct((m, n_pad), jnp.float32),
            grid=grid,
            in_specs=[
                pl.BlockSpec((tm, hidden), lambda i: (i, 0)),    # x tile (pipelined)
                pl.BlockSpec((hidden, half), lambda i: (0, 0)),  # w1 (VMEM-resident)
                pl.BlockSpec((1, half), lambda i: (0, 0)),       # b1 (resident)
                pl.BlockSpec((half, n_pad), lambda i: (0, 0)),   # fused head weight
                pl.BlockSpec((1, n_pad), lambda i: (0, 0)),      # fused head bias
            ],
            out_specs=pl.BlockSpec((tm, n_pad), lambda i: (i, 0)),
            compiler_params=pltpu.CompilerParams(
                dimension_semantics=("parallel",),
                vmem_limit_bytes=32 * 1024 * 1024,
            ),
            cost_estimate=pl.CostEstimate(
                flops=flops, transcendentals=0, bytes_accessed=bytes_accessed
            ),
        )(x2d, w1_b, b1_2d, wh_b, bh_2d)

        # Single slice over the valid lanes, then split sub/obj via a reshape.
        out = out[:, :n_fused].reshape(bs, seq_len, 2, tag)
        return out[:, :, 0, :], out[:, :, 1, :]

    return fwd


if __name__ == "__main__":
    # Small shapes consistent with the module's forward.
    bs, seq_len, hidden, tag_size = 2, 8, 32, 8
    half = hidden // 2

    key = jax.random.PRNGKey(0)
    kx, k1, k2, k3, k4, k5, k6 = jax.random.split(key, 7)

    x = jax.random.normal(kx, (bs, seq_len, hidden), dtype=jnp.float32)

    # Deterministic parameter init; weights stored pre-transposed (in, out).
    w1 = jax.random.normal(k1, (hidden, half), dtype=jnp.float32) * 0.1
    b1 = jax.random.normal(k2, (half,), dtype=jnp.float32) * 0.1
    w_sub = jax.random.normal(k3, (half, tag_size), dtype=jnp.float32) * 0.1
    b_sub = jax.random.normal(k4, (tag_size,), dtype=jnp.float32) * 0.1
    w_obj = jax.random.normal(k5, (half, tag_size), dtype=jnp.float32) * 0.1
    b_obj = jax.random.normal(k6, (tag_size,), dtype=jnp.float32) * 0.1

    # One-time weight fusion / cast (outside the per-call hot path).
    seq_label_fwd = make_sequence_label_for_so(w1, b1, w_sub, b_sub, w_obj, b_obj)

    sub_out, obj_out = seq_label_fwd(x)
    jax.block_until_ready((sub_out, obj_out))

    # Reference check in plain JAX (f32). Kernel uses bf16 MXU operands with
    # f32 accumulation, so tolerance is relaxed accordingly.
    tmp_ref = jnp.maximum(x @ w1 + b1, 0.0)
    sub_ref = tmp_ref @ w_sub + b_sub
    obj_ref = tmp_ref @ w_obj + b_obj
    assert sub_out.shape == (bs, seq_len, tag_size)
    assert obj_out.shape == (bs, seq_len, tag_size)
    assert jnp.allclose(sub_out, sub_ref, atol=2e-2, rtol=2e-2), "sub mismatch"
    assert jnp.allclose(obj_out, obj_ref, atol=2e-2, rtol=2e-2), "obj mismatch"

    print("KERNEL_OK")
</pallas_src>

<mosaic_0001>
module attributes {stable_mosaic.version = 11 : i64} {
  func.func @_seq_label_kernel(%arg0: i32, %arg1: memref<16x32xf32, #tpu.memory_space<vmem>>, %arg2: memref<32x16xbf16, #tpu.memory_space<vmem>>, %arg3: memref<1x16xf32, #tpu.memory_space<vmem>>, %arg4: memref<16x128xbf16, #tpu.memory_space<vmem>>, %arg5: memref<1x128xf32, #tpu.memory_space<vmem>>, %arg6: memref<16x128xf32, #tpu.memory_space<vmem>>) attributes {dimension_semantics = [#tpu.dimension_semantics<parallel>], iteration_bounds = array<i64: 1>, scalar_prefetch = 0 : i64, scratch_operands = 0 : i64, tpu.core_type = #tpu.core_type<tc>, window_params = [{transform_indices = @transform_0, window_bounds = array<i64: 16, 32>}, {pipeline_mode = #tpu.pipeline_mode<synchronous>, transform_indices = @transform_1, window_bounds = array<i64: 32, 16>}, {pipeline_mode = #tpu.pipeline_mode<synchronous>, transform_indices = @transform_2, window_bounds = array<i64: 1, 16>}, {pipeline_mode = #tpu.pipeline_mode<synchronous>, transform_indices = @transform_3, window_bounds = array<i64: 16, 128>}, {pipeline_mode = #tpu.pipeline_mode<synchronous>, transform_indices = @transform_4, window_bounds = array<i64: 1, 128>}, {transform_indices = @transform_5, window_bounds = array<i64: 16, 128>}]} {
    %c0 = arith.constant 0 : index
    %c0_0 = arith.constant 0 : index
    %0 = vector.load %arg1[%c0, %c0_0] : memref<16x32xf32, #tpu.memory_space<vmem>>, vector<16x32xf32>
    %1 = arith.truncf %0 : vector<16x32xf32> to vector<16x32xbf16>
    %c0_1 = arith.constant 0 : index
    %c0_2 = arith.constant 0 : index
    %2 = vector.load %arg2[%c0_1, %c0_2] : memref<32x16xbf16, #tpu.memory_space<vmem>>, vector<32x16xbf16>
    %cst = arith.constant dense<0.000000e+00> : vector<16x16xf32>
    %3 = tpu.matmul %1, %2, %cst {dimension_numbers = #tpu.dot_dimension_numbers<[1], [0], [0], [1], [0, 0, 1, 1], [], []>} : vector<16x32xbf16>, vector<32x16xbf16>, vector<16x16xf32> -> vector<16x16xf32>
    %c0_3 = arith.constant 0 : index
    %c0_4 = arith.constant 0 : index
    %4 = vector.load %arg3[%c0_3, %c0_4] : memref<1x16xf32, #tpu.memory_space<vmem>>, vector<1x16xf32>
    %5 = vector.broadcast %4 : vector<1x16xf32> to vector<16x16xf32>
    %6 = arith.addf %3, %5 : vector<16x16xf32>
    %cst_5 = arith.constant 0.000000e+00 : f32
    %7 = vector.broadcast %cst_5 : f32 to vector<16x16xf32>
    %8 = arith.maximumf %6, %7 : vector<16x16xf32>
    %9 = arith.truncf %8 : vector<16x16xf32> to vector<16x16xbf16>
    %c0_6 = arith.constant 0 : index
    %c0_7 = arith.constant 0 : index
    %10 = vector.load %arg4[%c0_6, %c0_7] : memref<16x128xbf16, #tpu.memory_space<vmem>>, vector<16x128xbf16>
    %cst_8 = arith.constant dense<0.000000e+00> : vector<16x128xf32>
    %11 = tpu.matmul %9, %10, %cst_8 {dimension_numbers = #tpu.dot_dimension_numbers<[1], [0], [0], [1], [0, 0, 1, 1], [], []>} : vector<16x16xbf16>, vector<16x128xbf16>, vector<16x128xf32> -> vector<16x128xf32>
    %c0_9 = arith.constant 0 : index
    %c0_10 = arith.constant 0 : index
    %12 = vector.load %arg5[%c0_9, %c0_10] : memref<1x128xf32, #tpu.memory_space<vmem>>, vector<1x128xf32>
    %13 = vector.broadcast %12 : vector<1x128xf32> to vector<16x128xf32>
    %14 = arith.addf %11, %13 : vector<16x128xf32>
    %c0_11 = arith.constant 0 : index
    %c0_12 = arith.constant 0 : index
    %15 = vector.load %arg6[%c0_11, %c0_12] : memref<16x128xf32, #tpu.memory_space<vmem>>, vector<16x128xf32>
    tpu.vector_store %arg6[%c0_11, %c0_12], %14 {strides = array<i32>} : memref<16x128xf32, #tpu.memory_space<vmem>>, vector<16x128xf32>,
    return
  }
  func.func @transform_0(%arg0: i32) -> (i32, i32) {
    %c0_i32 = arith.constant 0 : i32
    %c0_i32_0 = arith.constant 0 : i32
    return %arg0, %c0_i32 : i32, i32
  }
  func.func @transform_1(%arg0: i32) -> (i32, i32) {
    %c0_i32 = arith.constant 0 : i32
    %c0_i32_0 = arith.constant 0 : i32
    %c0_i32_1 = arith.constant 0 : i32
    return %c0_i32, %c0_i32_0 : i32, i32
  }
  func.func @transform_2(%arg0: i32) -> (i32, i32) {
    %c0_i32 = arith.constant 0 : i32
    %c0_i32_0 = arith.constant 0 : i32
    %c0_i32_1 = arith.constant 0 : i32
    return %c0_i32, %c0_i32_0 : i32, i32
  }
  func.func @transform_3(%arg0: i32) -> (i32, i32) {
    %c0_i32 = arith.constant 0 : i32
    %c0_i32_0 = arith.constant 0 : i32
    %c0_i32_1 = arith.constant 0 : i32
    return %c0_i32, %c0_i32_0 : i32, i32
  }
  func.func @transform_4(%arg0: i32) -> (i32, i32) {
    %c0_i32 = arith.constant 0 : i32
    %c0_i32_0 = arith.constant 0 : i32
    %c0_i32_1 = arith.constant 0 : i32
    return %c0_i32, %c0_i32_0 : i32, i32
  }
  func.func @transform_5(%arg0: i32) -> (i32, i32) {
    %c0_i32 = arith.constant 0 : i32
    %c0_i32_0 = arith.constant 0 : i32
    return %arg0, %c0_i32 : i32, i32
  }
}

</mosaic_0001>

<llo_original>
// kernel: fwd.1
$region0: #{fwd.1}
  #allocation0 [shape = 'u32[]', space=smem, size = 0x4, offset = 0x4, fixed_abs, tag = 'smem constant byte address 0x4 - core index']
  #allocation1 [shape = 'u32[144,128]{1,0:T(1,128)}', space=vmem, size = 0x12000, scoped, tag = 'internal scratch']
  %s0 = inlined_call_operand.hbm [shape: f32[16,32], index: 0, kind: input, shape index: {}]
  %s1 = inlined_call_operand.hbm [shape: bf16[32,16], index: 1, kind: input, shape index: {}]
  %s2 = inlined_call_operand.vmem [shape: f32[1,16], index: 2, kind: input, shape index: {}]
  %s3 = inlined_call_operand.hbm [shape: bf16[16,128], index: 3, kind: input, shape index: {}]
  %s4 = inlined_call_operand.vmem [shape: f32[1,128], index: 4, kind: input, shape index: {}]
  %s5 = inlined_call_operand.vmem [shape: f32[16,128], index: 5, kind: output, shape index: {}]
  %s6 = sld [smem:[#allocation0]]
  $region42: #{fwd.1} parent=0
    _
  %s8 = ssub.s32 1, %s6
  %s9 = scalar_select 0, %s8, %s6
  $region1: #{fwd.1} parent=0
    #allocation2 [shape = 'u8[8192]{0}', space=vmem, size = 0x2000, scoped, tag = 'input window, operand 0, single buffered']
    #allocation3 [shape = 's32[1]{0}', space=sflag, size = 0x4, scoped, tag = 'scoped memory for fwd.1']
    #allocation4 [shape = 'u8[8192]{0}', space=vmem, size = 0x2000, scoped, tag = 'input window, operand 1, single buffered']
    #allocation5 [shape = 's32[1]{0}', space=sflag, size = 0x4, scoped, tag = 'scoped memory for fwd.1']
    #allocation6 [shape = 'u8[4096]{0}', space=vmem, size = 0x1000, scoped, tag = 'input window, operand 3, single buffered']
    %10 = vsyncpa [#allocation3], 0
    %11 = vsyncpa [#allocation5], 0
    // Predicated region
    $region2: #{fwd.1} parent=1 // pred_check
      _
    $region3: #{fwd.1} parent=1 // pred_check_branch
      %13 = sbr.rel (0) target = $region5
    $region4: #{fwd.1} parent=1 // pred_region
      %s15 = ssub.s32 256, 256
      %16 = vsyncadd [#allocation3], %s15
      %s17 = sshll.u32 [#allocation2], 4
      %s18 = int_to_ptr.vmem [resolvable:$true] %s17
      %23 = dma.hbm_to_vmem [thread:$0]  %s0, 256, %s18, [#allocation3], 128, 128, 8
    $region5: #{fwd.1} parent=1 // pred_fallthru
      _
    // Predicated region
    $region6: #{fwd.1} parent=1 // pred_check
      _
    $region7: #{fwd.1} parent=1 // pred_check_branch
      %25 = sbr.rel (0) target = $region9
    $region8: #{fwd.1} parent=1 // pred_region
      %s27 = ssub.s32 256, 256
      %28 = vsyncadd [#allocation5], %s27
      %s29 = sshll.u32 [#allocation4], 4
      %s30 = int_to_ptr.vmem [resolvable:$true] %s29
      %35 = dma.hbm_to_vmem [thread:$0]  %s1, 256, %s30, [#allocation5], 64, 64, 4
    $region9: #{fwd.1} parent=1 // pred_fallthru
      _
    // Predicated region
    $region10: #{fwd.1} parent=1 // pred_check
      _
    $region11: #{fwd.1} parent=1 // pred_check_branch
      %37 = sbr.rel (0) target = $region13
    $region12: #{fwd.1} parent=1 // pred_region
      _
    $region13: #{fwd.1} parent=1 // pred_fallthru
      _
    // Predicated region
    $region14: #{fwd.1} parent=1 // pred_check
      _
    $region15: #{fwd.1} parent=1 // pred_check_branch
      %39 = sbr.rel (0) target = $region17
    $region16: #{fwd.1} parent=1 // pred_region
      %s41 = ssub.s32 128, 128
      %42 = vsyncadd [#allocation5], %s41
      %s43 = sshll.u32 [#allocation6], 4
      %s44 = int_to_ptr.vmem [resolvable:$true] %s43
      %49 = dma.hbm_to_vmem [thread:$0]  %s3, 128, %s44, [#allocation5], 64, 64, 4
    $region17: #{fwd.1} parent=1 // pred_fallthru
      _
    // Predicated region
    $region18: #{fwd.1} parent=1 // pred_check
      _
    $region19: #{fwd.1} parent=1 // pred_check_branch
      %51 = sbr.rel (0) target = $region21
    $region20: #{fwd.1} parent=1 // pred_region
      _
    $region21: #{fwd.1} parent=1 // pred_fallthru
      _
    // Predicated region
    $region22: #{fwd.1} parent=1 // pred_check
      _
    $region23: #{fwd.1} parent=1 // pred_check_branch
      %53 = sbr.rel (0) target = $region25
    $region24: #{fwd.1} parent=1 // pred_region
      %54 = dma.done [#allocation3], 256
    $region25: #{fwd.1} parent=1 // pred_fallthru
      _
    // Predicated region
    $region26: #{fwd.1} parent=1 // pred_check
      _
    $region27: #{fwd.1} parent=1 // pred_check_branch
      %56 = sbr.rel (0) target = $region29
    $region28: #{fwd.1} parent=1 // pred_region
      %57 = dma.done [#allocation5], 256
    $region29: #{fwd.1} parent=1 // pred_fallthru
      _
    // Predicated region
    $region30: #{fwd.1} parent=1 // pred_check
      _
    $region31: #{fwd.1} parent=1 // pred_check_branch
      %59 = sbr.rel (0) target = $region33
    $region32: #{fwd.1} parent=1 // pred_region
      %60 = dma.done [#allocation5], 128
    $region33: #{fwd.1} parent=1 // pred_fallthru
      _
    %v62 = vld [vmem:[#allocation2] sm:$0xff]
    %v63 = vld [vmem:[#allocation2 + $0x8] sm:$0xff]
    %v64 = vpack.c.bf16 %v63, %v62
    %v65 = vld [vmem:[#allocation4] sm:$0xf]
    %v66 = vld [vmem:[#allocation4 + $0x4] sm:$0xf]
    %v67 = vld [vmem:[#allocation4 + $0x8] sm:$0xf]
    %v68 = vld [vmem:[#allocation4 + $0xc] sm:$0xf]
    %v69 = vld [vmem:[%s2] sm:$0x1]
    %v71 = vlaneseq
    %v72 = vshrl.u32 %v71, 7
    %v73 = vsub.s32 0, %v72
    %v74 = vrot.slane %v69, %v73
    %v80 = vunpack.c.l.b16 %v65
    %v81 = vunpack.c.l.b16 %v66
    %v82 = vunpack.c.l.b16 %v67
    %v83 = vunpack.c.l.b16 %v68
    %v84 = vpack.c.b16 %v81, %v80
    %v85 = vpack.c.b16 %v83, %v82
    %vm88 = vcmask 261120
    %v90 = vsel %vm88, %v64, 0
    %92 = vmatprep.subr.bf16.mxu0 0
    %93 = vmatpush1.bf16.msra.mxu0 0
    %94 = vmatprep.subr.bf16.mxu0 0
    %95 = vmatpush1.bf16.msra.mxu0 0
    %96 = vmatprep.subr.bf16.mxu0 0
    %97 = vmatpush1.bf16.msra.mxu0 0
    %98 = vmatprep.subr.bf16.mxu0 0
    %99 = vmatpush1.bf16.msra.mxu0 0
    %100 = vmatprep.subr.bf16.mxu0 0
    %101 = vmatpush1.bf16.msra.mxu0 0
    %102 = vmatprep.subr.bf16.mxu0 0
    %103 = vmatpush1.bf16.msra.mxu0 0
    %104 = vmatprep.subr.bf16.mxu0 0
    %105 = vmatpush1.bf16.msra.mxu0 %v85
    %106 = vmatprep.subr.bf16.mxu0 0
    %107 = vmatpush1.bf16.msra.mxu0 %v84
    %108 = vmatprep.subr.bf16.mxu0 0
    %109 = vmatpush2.bf16.msra.mxu0 0
    %110 = vmatprep.subr.bf16.mxu0 0
    %111 = vmatpush2.bf16.msra.mxu0 0
    %112 = vmatprep.subr.bf16.mxu0 0
    %113 = vmatpush2.bf16.msra.mxu0 0
    %114 = vmatprep.subr.bf16.mxu0 0
    %115 = vmatpush2.bf16.msra.mxu0 0
    %116 = vmatprep.subr.bf16.mxu0 0
    %117 = vmatpush2.bf16.msra.mxu0 0
    %118 = vmatprep.subr.bf16.mxu0 0
    %119 = vmatpush2.bf16.msra.mxu0 0
    %120 = vmatprep.subr.bf16.mxu0 0
    %121 = vmatpush2.bf16.msra.mxu0 0
    %122 = vmatprep.subr.bf16.mxu0 0
    %123 = vmatpush2.bf16.msra.mxu0 0
    %124 = vmatprep.mubr.bf16.mxu0 0
    %125 = vmatmul.mubr.bf16.gmra.mxu0 %v90
    %v126 = vpop.f32.mrf.mxu0
    %v127 = vadd.f32 %v74, %v126
    %v128 = vpop.f32.mrf.mxu0
    %v129 = vpop.f32.mrf.mxu0
    %v130 = vadd.f32 %v74, %v129
    %v131 = vpop.f32.mrf.mxu0
    %132 = vdwg.mxu0
    %v133 = vmax.f32 %v127, 0.0
    %v134 = vmax.f32 %v130, 0.0
    %v135 = vpack.c.bf16 %v134, %v133
    %v136 = vld [vmem:[#allocation6] sm:$0xf]
    %v137 = vld [vmem:[#allocation6 + $0x4] sm:$0xf]
    %v138 = vld [vmem:[%s4] sm:$0x1]
    %v140 = vlaneseq
    %v141 = vshrl.u32 %v140, 7
    %v142 = vsub.s32 0, %v141
    %v143 = vrot.slane %v138, %v142
    %v147 = vunpack.c.l.b16 %v136
    %v148 = vunpack.c.l.b16 %v137
    %v149 = vpack.c.b16 %v148, %v147
    %vm151 = vcmask 130048
    %v153 = vsel %vm151, %v135, 0
    %155 = vmatprep.subr.bf16.mxu0 0
    %156 = vmatpush1.bf16.msra.mxu0 0
    %157 = vmatprep.subr.bf16.mxu0 0
    %158 = vmatpush1.bf16.msra.mxu0 0
    %159 = vmatprep.subr.bf16.mxu0 0
    %160 = vmatpush1.bf16.msra.mxu0 0
    %161 = vmatprep.subr.bf16.mxu0 0
    %162 = vmatpush1.bf16.msra.mxu0 0
    %163 = vmatprep.subr.bf16.mxu0 0
    %164 = vmatpush1.bf16.msra.mxu0 0
    %165 = vmatprep.subr.bf16.mxu0 0
    %166 = vmatpush1.bf16.msra.mxu0 0
    %167 = vmatprep.subr.bf16.mxu0 0
    %168 = vmatpush1.bf16.msra.mxu0 0
    %169 = vmatprep.subr.bf16.mxu0 0
    %170 = vmatpush1.bf16.msra.mxu0 %v149
    %171 = vmatprep.subr.bf16.mxu0 0
    %172 = vmatpush2.bf16.msra.mxu0 0
    %173 = vmatprep.subr.bf16.mxu0 0
    %174 = vmatpush2.bf16.msra.mxu0 0
    %175 = vmatprep.subr.bf16.mxu0 0
    %176 = vmatpush2.bf16.msra.mxu0 0
    %177 = vmatprep.subr.bf16.mxu0 0
    %178 = vmatpush2.bf16.msra.mxu0 0
    %179 = vmatprep.subr.bf16.mxu0 0
    %180 = vmatpush2.bf16.msra.mxu0 0
    %181 = vmatprep.subr.bf16.mxu0 0
    %182 = vmatpush2.bf16.msra.mxu0 0
    %183 = vmatprep.subr.bf16.mxu0 0
    %184 = vmatpush2.bf16.msra.mxu0 0
    %185 = vmatprep.subr.bf16.mxu0 0
    %186 = vmatpush2.bf16.msra.mxu0 0
    %187 = vmatprep.mubr.bf16.mxu0 0
    %188 = vmatmul.mubr.bf16.gmra.mxu0 %v153
    %v189 = vpop.f32.mrf.mxu0
    %v190 = vadd.f32 %v143, %v189
    %v191 = vpop.f32.mrf.mxu0
    %v192 = vpop.f32.mrf.mxu0
    %v193 = vadd.f32 %v143, %v192
    %v194 = vpop.f32.mrf.mxu0
    %195 = vdwg.mxu0
    %196 = vst [vmem:[%s5] sm:$0xff] %v190
    %197 = vst [vmem:[%s5 + $0x8] sm:$0xff] %v193
    // Predicated region
    $region34: #{fwd.1} parent=1 // pred_check
      _
    $region35: #{fwd.1} parent=1 // pred_check_branch
      %199 = sbr.rel (0) target = $region37
    $region36: #{fwd.1} parent=1 // pred_region
      _
    $region37: #{fwd.1} parent=1 // pred_fallthru
      _
    // Predicated region
    $region38: #{fwd.1} parent=1 // pred_check
      _
    $region39: #{fwd.1} parent=1 // pred_check_branch
      %201 = sbr.rel (0) target = $region41
    $region40: #{fwd.1} parent=1 // pred_region
      _
    $region41: #{fwd.1} parent=1 // pred_fallthru
      _
    %202 = vsyncpa [#allocation3], 1
    %203 = vsyncpa [#allocation5], 1

</llo_original>
